<compile_context>
chip_gen: v7x
topology: tpu7x:2x2x1
jax: 0.10.0
libtpu: 0.0.40
codegen_flags: <defaults>
</compile_context>

<pallas_src>
import jax
import jax.numpy as jnp
from jax.experimental import pallas as pl
from jax.experimental.pallas import tpu as pltpu


def decoupled_uniformity_kernel(x_ref, we_ref, be_ref, w1_ref, b1_ref,
                                w2_ref, b2_ref, z_ref):
    # encoder (stand-in base_encoder): Linear(C*H*W -> dim), bf16 in / f32 acc
    h = jnp.dot(x_ref[...], we_ref[...],
                preferred_element_type=jnp.float32) + be_ref[...]
    # head: ReLU -> Linear(dim, dim) -> ReLU -> Linear(dim, proj_dim_padded)
    h = jnp.maximum(h, 0.0).astype(jnp.bfloat16)
    h = jnp.dot(h, w1_ref[...],
                preferred_element_type=jnp.float32) + b1_ref[...]
    h = jnp.maximum(h, 0.0).astype(jnp.bfloat16)
    z = jnp.dot(h, w2_ref[...],
                preferred_element_type=jnp.float32) + b2_ref[...]
    z_ref[...] = z.astype(z_ref.dtype)   # lane-dense (multiple-of-128) store


def decoupled_uniformity_forward(x_nchw, params, *, tile_b=None):
    """x_nchw: (B, C, H, W) float32.  Returns z: (B, proj_dim) float32."""
    B, C, H, W = x_nchw.shape
    F = C * H * W
    x_flat = x_nchw.reshape(B, F)  # same order as torch .view(B, -1)

    we, be, w1, b1, w2, b2 = params
    dim = we.shape[1]
    proj_dim = w2.shape[1]

    # Lane-dense output: pad projection dim to a multiple of 128 so the final
    # store uses full unmasked vst and the last matmul fills the MXU N block.
    proj_pad = ((proj_dim + 127) // 128) * 128
    w2p = jnp.pad(w2, ((0, 0), (0, proj_pad - proj_dim)))
    b2p = jnp.pad(b2, ((0, 0), (0, proj_pad - proj_dim)))

    # bf16 matmul operands (accumulation stays f32 inside the kernel).
    x_bf = x_flat.astype(jnp.bfloat16)
    we_bf = we.astype(jnp.bfloat16)
    w1_bf = w1.astype(jnp.bfloat16)
    w2_bf = w2p.astype(jnp.bfloat16)
    be_f = be.astype(jnp.float32)
    b1_f = b1.astype(jnp.float32)
    b2_f = b2p.astype(jnp.float32)

    # Single grid step for small batches: the whole problem (activations +
    # weights) fits in VMEM, so avoid per-step pipeline overhead and weight
    # re-buffering entirely.  Large batches use 128-row tiles (full MXU M).
    if tile_b is None:
        tile_b = B if B <= 512 else 128
    assert B % tile_b == 0
    grid = (B // tile_b,)

    # TODO(synk): for realistic encoder feature sizes (e.g. 3x224x224 ->
    # F=150528, W_enc ~38 MiB bf16) the full-weight-resident design exceeds
    # v7x VMEM — add a K-grid axis over F with an f32 accumulator scratch
    # (pl.when init/finalize) and set vmem_limit_bytes with headroom.

    flops = 2 * B * (F * dim + dim * dim + dim * proj_pad)
    bytes_accessed = (
        x_bf.size * 2 + we_bf.size * 2 + w1_bf.size * 2 + w2_bf.size * 2
        + (be_f.size + b1_f.size + b2_f.size) * 4 + B * proj_pad * 4)

    kernel = pl.pallas_call(
        decoupled_uniformity_kernel,
        out_shape=jax.ShapeDtypeStruct((B, proj_pad), jnp.float32),
        grid_spec=pltpu.PrefetchScalarGridSpec(
            num_scalar_prefetch=0,
            grid=grid,
            in_specs=[
                pl.BlockSpec((tile_b, F), lambda i: (i, 0)),       # x tile
                pl.BlockSpec((F, dim), lambda i: (0, 0)),          # W_enc
                pl.BlockSpec((1, dim), lambda i: (0, 0)),          # b_enc
                pl.BlockSpec((dim, dim), lambda i: (0, 0)),        # W1
                pl.BlockSpec((1, dim), lambda i: (0, 0)),          # b1
                pl.BlockSpec((dim, proj_pad), lambda i: (0, 0)),   # W2 (padded)
                pl.BlockSpec((1, proj_pad), lambda i: (0, 0)),     # b2 (padded)
            ],
            out_specs=pl.BlockSpec((tile_b, proj_pad), lambda i: (i, 0)),
        ),
        compiler_params=pltpu.CompilerParams(
            dimension_semantics=("parallel",)),
        cost_estimate=pl.CostEstimate(
            flops=flops, transcendentals=0, bytes_accessed=bytes_accessed),
    )
    z_pad = kernel(x_bf, we_bf, be_f, w1_bf, b1_f, w2_bf, b2_f)
    return z_pad[:, :proj_dim]


def init_params(key, in_features, dim, proj_dim):
    """Deterministic synthetic weights (no checkpoint load)."""
    ks = jax.random.split(key, 6)
    scale_e = 1.0 / jnp.sqrt(in_features)
    scale_1 = 1.0 / jnp.sqrt(dim)
    we = jax.random.normal(ks[0], (in_features, dim), jnp.float32) * scale_e
    be = jax.random.normal(ks[1], (1, dim), jnp.float32) * 0.01
    w1 = jax.random.normal(ks[2], (dim, dim), jnp.float32) * scale_1
    b1 = jax.random.normal(ks[3], (1, dim), jnp.float32) * 0.01
    w2 = jax.random.normal(ks[4], (dim, proj_dim), jnp.float32) * scale_1
    b2 = jax.random.normal(ks[5], (1, proj_dim), jnp.float32) * 0.01
    return (we, be, w1, b1, w2, b2)


def reference_forward(x_nchw, params):
    """Pure-JAX f32 reference of the module forward."""
    we, be, w1, b1, w2, b2 = params
    B = x_nchw.shape[0]
    h = x_nchw.reshape(B, -1) @ we + be            # encoder (synthetic)
    h = jnp.maximum(h, 0.0)                        # head: ReLU
    h = h @ w1 + b1                                # head: Linear(dim, dim)
    h = jnp.maximum(h, 0.0)                        # head: ReLU
    return h @ w2 + b2                             # head: Linear(dim, proj_dim)


if __name__ == "__main__":
    # bsize=8, nviews=2 -> B=16 images; C=3, H=W=16 (small synthetic shapes)
    # dim=128 (projection-head hidden), proj_dim=64 (output projection)
    B, C, H, W = 16, 3, 16, 16
    dim, proj_dim = 128, 64

    key = jax.random.PRNGKey(0)
    kx, kp = jax.random.split(key)
    x = jax.random.normal(kx, (B, C, H, W), jnp.float32)
    params = init_params(kp, C * H * W, dim, proj_dim)

    # TODO(synk): base_encoder is an injected factory (e.g. a ResNet); it is
    # synthesized here as a single Linear encoder — the head is exact.
    z = decoupled_uniformity_forward(x, params)
    z = jax.block_until_ready(z)

    z_ref = reference_forward(x, params)
    assert z.shape == (B, proj_dim)
    # bf16 MXU operands (f32 accumulation) vs. f32 reference: expect ~1e-2
    # relative error for the F=768 contraction chain.
    assert jnp.allclose(z, z_ref, atol=1e-1, rtol=1e-1), (
        float(jnp.max(jnp.abs(z - z_ref))))
    print("KERNEL_OK")
</pallas_src>

<mosaic_0001>
module attributes {stable_mosaic.version = 11 : i64} {
  func.func @decoupled_uniformity_kernel(%arg0: i32, %arg1: memref<16x768xbf16, #tpu.memory_space<vmem>>, %arg2: memref<768x128xbf16, #tpu.memory_space<vmem>>, %arg3: memref<1x128xf32, #tpu.memory_space<vmem>>, %arg4: memref<128x128xbf16, #tpu.memory_space<vmem>>, %arg5: memref<1x128xf32, #tpu.memory_space<vmem>>, %arg6: memref<128x128xbf16, #tpu.memory_space<vmem>>, %arg7: memref<1x128xf32, #tpu.memory_space<vmem>>, %arg8: memref<16x128xf32, #tpu.memory_space<vmem>>) attributes {dimension_semantics = [#tpu.dimension_semantics<parallel>], iteration_bounds = array<i64: 1>, scalar_prefetch = 0 : i64, scratch_operands = 0 : i64, tpu.core_type = #tpu.core_type<tc>, window_params = [{transform_indices = @transform_0, window_bounds = array<i64: 16, 768>}, {pipeline_mode = #tpu.pipeline_mode<synchronous>, transform_indices = @transform_1, window_bounds = array<i64: 768, 128>}, {pipeline_mode = #tpu.pipeline_mode<synchronous>, transform_indices = @transform_2, window_bounds = array<i64: 1, 128>}, {pipeline_mode = #tpu.pipeline_mode<synchronous>, transform_indices = @transform_3, window_bounds = array<i64: 128, 128>}, {pipeline_mode = #tpu.pipeline_mode<synchronous>, transform_indices = @transform_4, window_bounds = array<i64: 1, 128>}, {pipeline_mode = #tpu.pipeline_mode<synchronous>, transform_indices = @transform_5, window_bounds = array<i64: 128, 128>}, {pipeline_mode = #tpu.pipeline_mode<synchronous>, transform_indices = @transform_6, window_bounds = array<i64: 1, 128>}, {transform_indices = @transform_7, window_bounds = array<i64: 16, 128>}]} {
    %c0 = arith.constant 0 : index
    %c0_0 = arith.constant 0 : index
    %0 = vector.load %arg1[%c0, %c0_0] : memref<16x768xbf16, #tpu.memory_space<vmem>>, vector<16x768xbf16>
    %c0_1 = arith.constant 0 : index
    %c0_2 = arith.constant 0 : index
    %1 = vector.load %arg2[%c0_1, %c0_2] : memref<768x128xbf16, #tpu.memory_space<vmem>>, vector<768x128xbf16>
    %cst = arith.constant dense<0.000000e+00> : vector<16x128xf32>
    %2 = tpu.matmul %0, %1, %cst {dimension_numbers = #tpu.dot_dimension_numbers<[1], [0], [0], [1], [0, 0, 1, 1], [], []>} : vector<16x768xbf16>, vector<768x128xbf16>, vector<16x128xf32> -> vector<16x128xf32>
    %c0_3 = arith.constant 0 : index
    %c0_4 = arith.constant 0 : index
    %3 = vector.load %arg3[%c0_3, %c0_4] : memref<1x128xf32, #tpu.memory_space<vmem>>, vector<1x128xf32>
    %4 = vector.broadcast %3 : vector<1x128xf32> to vector<16x128xf32>
    %5 = arith.addf %2, %4 : vector<16x128xf32>
    %cst_5 = arith.constant 0.000000e+00 : f32
    %6 = vector.broadcast %cst_5 : f32 to vector<16x128xf32>
    %7 = arith.maximumf %5, %6 : vector<16x128xf32>
    %8 = arith.truncf %7 : vector<16x128xf32> to vector<16x128xbf16>
    %c0_6 = arith.constant 0 : index
    %c0_7 = arith.constant 0 : index
    %9 = vector.load %arg4[%c0_6, %c0_7] : memref<128x128xbf16, #tpu.memory_space<vmem>>, vector<128x128xbf16>
    %cst_8 = arith.constant dense<0.000000e+00> : vector<16x128xf32>
    %10 = tpu.matmul %8, %9, %cst_8 {dimension_numbers = #tpu.dot_dimension_numbers<[1], [0], [0], [1], [0, 0, 1, 1], [], []>} : vector<16x128xbf16>, vector<128x128xbf16>, vector<16x128xf32> -> vector<16x128xf32>
    %c0_9 = arith.constant 0 : index
    %c0_10 = arith.constant 0 : index
    %11 = vector.load %arg5[%c0_9, %c0_10] : memref<1x128xf32, #tpu.memory_space<vmem>>, vector<1x128xf32>
    %12 = vector.broadcast %11 : vector<1x128xf32> to vector<16x128xf32>
    %13 = arith.addf %10, %12 : vector<16x128xf32>
    %cst_11 = arith.constant 0.000000e+00 : f32
    %14 = vector.broadcast %cst_11 : f32 to vector<16x128xf32>
    %15 = arith.maximumf %13, %14 : vector<16x128xf32>
    %16 = arith.truncf %15 : vector<16x128xf32> to vector<16x128xbf16>
    %c0_12 = arith.constant 0 : index
    %c0_13 = arith.constant 0 : index
    %17 = vector.load %arg6[%c0_12, %c0_13] : memref<128x128xbf16, #tpu.memory_space<vmem>>, vector<128x128xbf16>
    %cst_14 = arith.constant dense<0.000000e+00> : vector<16x128xf32>
    %18 = tpu.matmul %16, %17, %cst_14 {dimension_numbers = #tpu.dot_dimension_numbers<[1], [0], [0], [1], [0, 0, 1, 1], [], []>} : vector<16x128xbf16>, vector<128x128xbf16>, vector<16x128xf32> -> vector<16x128xf32>
    %c0_15 = arith.constant 0 : index
    %c0_16 = arith.constant 0 : index
    %19 = vector.load %arg7[%c0_15, %c0_16] : memref<1x128xf32, #tpu.memory_space<vmem>>, vector<1x128xf32>
    %20 = vector.broadcast %19 : vector<1x128xf32> to vector<16x128xf32>
    %21 = arith.addf %18, %20 : vector<16x128xf32>
    %c0_17 = arith.constant 0 : index
    %c0_18 = arith.constant 0 : index
    %22 = vector.load %arg8[%c0_17, %c0_18] : memref<16x128xf32, #tpu.memory_space<vmem>>, vector<16x128xf32>
    tpu.vector_store %arg8[%c0_17, %c0_18], %21 {strides = array<i32>} : memref<16x128xf32, #tpu.memory_space<vmem>>, vector<16x128xf32>,
    return
  }
  func.func @transform_0(%arg0: i32) -> (i32, i32) {
    %c0_i32 = arith.constant 0 : i32
    %c0_i32_0 = arith.constant 0 : i32
    return %arg0, %c0_i32 : i32, i32
  }
  func.func @transform_1(%arg0: i32) -> (i32, i32) {
    %c0_i32 = arith.constant 0 : i32
    %c0_i32_0 = arith.constant 0 : i32
    %c0_i32_1 = arith.constant 0 : i32
    return %c0_i32, %c0_i32_0 : i32, i32
  }
  func.func @transform_2(%arg0: i32) -> (i32, i32) {
    %c0_i32 = arith.constant 0 : i32
    %c0_i32_0 = arith.constant 0 : i32
    %c0_i32_1 = arith.constant 0 : i32
    return %c0_i32, %c0_i32_0 : i32, i32
  }
  func.func @transform_3(%arg0: i32) -> (i32, i32) {
    %c0_i32 = arith.constant 0 : i32
    %c0_i32_0 = arith.constant 0 : i32
    %c0_i32_1 = arith.constant 0 : i32
    return %c0_i32, %c0_i32_0 : i32, i32
  }
  func.func @transform_4(%arg0: i32) -> (i32, i32) {
    %c0_i32 = arith.constant 0 : i32
    %c0_i32_0 = arith.constant 0 : i32
    %c0_i32_1 = arith.constant 0 : i32
    return %c0_i32, %c0_i32_0 : i32, i32
  }
  func.func @transform_5(%arg0: i32) -> (i32, i32) {
    %c0_i32 = arith.constant 0 : i32
    %c0_i32_0 = arith.constant 0 : i32
    %c0_i32_1 = arith.constant 0 : i32
    return %c0_i32, %c0_i32_0 : i32, i32
  }
  func.func @transform_6(%arg0: i32) -> (i32, i32) {
    %c0_i32 = arith.constant 0 : i32
    %c0_i32_0 = arith.constant 0 : i32
    %c0_i32_1 = arith.constant 0 : i32
    return %c0_i32, %c0_i32_0 : i32, i32
  }
  func.func @transform_7(%arg0: i32) -> (i32, i32) {
    %c0_i32 = arith.constant 0 : i32
    %c0_i32_0 = arith.constant 0 : i32
    return %arg0, %c0_i32 : i32, i32
  }
}

</mosaic_0001>

<llo_original>
// kernel: tpu_custom_call.1
$region0: #{tpu_custom_call.1}
  #allocation0 [shape = 'u32[]', space=smem, size = 0x4, offset = 0x4, fixed_abs, tag = 'smem constant byte address 0x4 - core index']
  #allocation1 [shape = 'u32[144,128]{1,0:T(1,128)}', space=vmem, size = 0x12000, scoped, tag = 'internal scratch']
  %s0 = inlined_call_operand.hbm [shape: bf16[16,768], index: 0, kind: input, shape index: {}]
  %s1 = inlined_call_operand.hbm [shape: bf16[768,128], index: 1, kind: input, shape index: {}]
  %s2 = inlined_call_operand.vmem [shape: f32[1,128], index: 2, kind: input, shape index: {}]
  %s3 = inlined_call_operand.hbm [shape: bf16[128,128], index: 3, kind: input, shape index: {}]
  %s4 = inlined_call_operand.vmem [shape: f32[1,128], index: 4, kind: input, shape index: {}]
  %s5 = inlined_call_operand.hbm [shape: bf16[128,128], index: 5, kind: input, shape index: {}]
  %s6 = inlined_call_operand.vmem [shape: f32[1,128], index: 6, kind: input, shape index: {}]
  %s7 = inlined_call_operand.hbm [shape: f32[16,128], index: 7, kind: output, shape index: {}]
  %s8 = sld [smem:[#allocation0]]
  $region54: #{tpu_custom_call.1} parent=0
    _
  %s10 = ssub.s32 1, %s8
  %s11 = scalar_select 0, %s10, %s8
  $region1: #{tpu_custom_call.1} parent=0
    #allocation2 [shape = 'u8[24576]{0}', space=vmem, size = 0x6000, scoped, tag = 'input window, operand 0, single buffered']
    #allocation3 [shape = 's32[1]{0}', space=sflag, size = 0x4, scoped, tag = 'scoped memory for tpu_custom_call.1']
    #allocation4 [shape = 's32[1]{0}', space=sflag, size = 0x4, scoped, tag = 'scoped memory for tpu_custom_call.1']
    #allocation5 [shape = 'u8[196608]{0}', space=vmem, size = 0x30000, scoped, tag = 'input window, operand 1, single buffered']
    #allocation6 [shape = 's32[1]{0}', space=sflag, size = 0x4, scoped, tag = 'scoped memory for tpu_custom_call.1']
    #allocation7 [shape = 'u8[32768]{0}', space=vmem, size = 0x8000, scoped, tag = 'input window, operand 3, single buffered']
    #allocation8 [shape = 'u8[32768]{0}', space=vmem, size = 0x8000, scoped, tag = 'input window, operand 5, single buffered']
    #allocation9 [shape = 's32[1]{0}', space=sflag, size = 0x4, scoped, tag = 'scoped memory for tpu_custom_call.1']
    #allocation10 [shape = 'u8[8192]{0}', space=vmem, size = 0x2000, scoped, tag = 'output window, operand 0, single buffered']
    %12 = vsyncpa [#allocation3], 0
    %13 = vsyncpa [#allocation6], 0
    %14 = vsyncpa [#allocation9], 0
    %15 = vsyncpa [#allocation4], 0
    // Predicated region
    $region2: #{tpu_custom_call.1} parent=1 // pred_check
      _
    $region3: #{tpu_custom_call.1} parent=1 // pred_check_branch
      %17 = sbr.rel (0) target = $region5
    $region4: #{tpu_custom_call.1} parent=1 // pred_region
      %s19 = ssub.s32 768, 768
      %20 = vsyncadd [#allocation3], %s19
      %s21 = sshll.u32 [#allocation2], 4
      %s22 = int_to_ptr.vmem [resolvable:$true] %s21
      %27 = dma.hbm_to_vmem [thread:$0]  %s0, 768, %s22, [#allocation3], 384, 384, 24
    $region5: #{tpu_custom_call.1} parent=1 // pred_fallthru
      _
    // Predicated region
    $region6: #{tpu_custom_call.1} parent=1 // pred_check
      _
    $region7: #{tpu_custom_call.1} parent=1 // pred_check_branch
      %29 = sbr.rel (0) target = $region9
    $region8: #{tpu_custom_call.1} parent=1 // pred_region
      %s31 = ssub.s32 6144, 6144
      %32 = vsyncadd [#allocation6], %s31
      %s33 = sshll.u32 [#allocation5], 4
      %s34 = int_to_ptr.vmem [resolvable:$true] %s33
      %39 = dma.hbm_to_vmem [thread:$0]  %s1, 6144, %s34, [#allocation6], 64, 64, 4
    $region9: #{tpu_custom_call.1} parent=1 // pred_fallthru
      _
    // Predicated region
    $region10: #{tpu_custom_call.1} parent=1 // pred_check
      _
    $region11: #{tpu_custom_call.1} parent=1 // pred_check_branch
      %41 = sbr.rel (0) target = $region13
    $region12: #{tpu_custom_call.1} parent=1 // pred_region
      _
    $region13: #{tpu_custom_call.1} parent=1 // pred_fallthru
      _
    // Predicated region
    $region14: #{tpu_custom_call.1} parent=1 // pred_check
      _
    $region15: #{tpu_custom_call.1} parent=1 // pred_check_branch
      %43 = sbr.rel (0) target = $region17
    $region16: #{tpu_custom_call.1} parent=1 // pred_region
      %s45 = ssub.s32 1024, 1024
      %46 = vsyncadd [#allocation6], %s45
      %s47 = sshll.u32 [#allocation7], 4
      %s48 = int_to_ptr.vmem [resolvable:$true] %s47
      %53 = dma.hbm_to_vmem [thread:$0]  %s3, 1024, %s48, [#allocation6], 64, 64, 4
    $region17: #{tpu_custom_call.1} parent=1 // pred_fallthru
      _
    // Predicated region
    $region18: #{tpu_custom_call.1} parent=1 // pred_check
      _
    $region19: #{tpu_custom_call.1} parent=1 // pred_check_branch
      %55 = sbr.rel (0) target = $region21
    $region20: #{tpu_custom_call.1} parent=1 // pred_region
      _
    $region21: #{tpu_custom_call.1} parent=1 // pred_fallthru
      _
    // Predicated region
    $region22: #{tpu_custom_call.1} parent=1 // pred_check
      _
    $region23: #{tpu_custom_call.1} parent=1 // pred_check_branch
      %57 = sbr.rel (0) target = $region25
    $region24: #{tpu_custom_call.1} parent=1 // pred_region
      %s59 = ssub.s32 1024, 1024
      %60 = vsyncadd [#allocation9], %s59
      %s61 = sshll.u32 [#allocation8], 4
      %s62 = int_to_ptr.vmem [resolvable:$true] %s61
      %67 = dma.hbm_to_vmem [thread:$0]  %s5, 1024, %s62, [#allocation9], 64, 64, 4
    $region25: #{tpu_custom_call.1} parent=1 // pred_fallthru
      _
    // Predicated region
    $region26: #{tpu_custom_call.1} parent=1 // pred_check
      _
    $region27: #{tpu_custom_call.1} parent=1 // pred_check_branch
      %69 = sbr.rel (0) target = $region29
    $region28: #{tpu_custom_call.1} parent=1 // pred_region
      _
    $region29: #{tpu_custom_call.1} parent=1 // pred_fallthru
      _
    // Predicated region
    $region30: #{tpu_custom_call.1} parent=1 // pred_check
      _
    $region31: #{tpu_custom_call.1} parent=1 // pred_check_branch
      %71 = sbr.rel (0) target = $region33
    $region32: #{tpu_custom_call.1} parent=1 // pred_region
      %72 = dma.done [#allocation3], 768
    $region33: #{tpu_custom_call.1} parent=1 // pred_fallthru
      _
    // Predicated region
    $region34: #{tpu_custom_call.1} parent=1 // pred_check
      _
    $region35: #{tpu_custom_call.1} parent=1 // pred_check_branch
      %74 = sbr.rel (0) target = $region37
    $region36: #{tpu_custom_call.1} parent=1 // pred_region
      %75 = dma.done [#allocation6], 6144
    $region37: #{tpu_custom_call.1} parent=1 // pred_fallthru
      _
    // Predicated region
    $region38: #{tpu_custom_call.1} parent=1 // pred_check
      _
    $region39: #{tpu_custom_call.1} parent=1 // pred_check_branch
      %77 = sbr.rel (0) target = $region41
    $region40: #{tpu_custom_call.1} parent=1 // pred_region
      %78 = dma.done [#allocation6], 1024
    $region41: #{tpu_custom_call.1} parent=1 // pred_fallthru
      _
    // Predicated region
    $region42: #{tpu_custom_call.1} parent=1 // pred_check
      _
    $region43: #{tpu_custom_call.1} parent=1 // pred_check_branch
      %80 = sbr.rel (0) target = $region45
    $region44: #{tpu_custom_call.1} parent=1 // pred_region
      %81 = dma.done [#allocation9], 1024
    $region45: #{tpu_custom_call.1} parent=1 // pred_fallthru
      _
    %v83 = vld [vmem:[#allocation2] sm:$0xff]
    %v84 = vld [vmem:[#allocation2 + $0x8] sm:$0xff]
    %v85 = vld [vmem:[#allocation2 + $0x10] sm:$0xff]
    %v86 = vld [vmem:[#allocation2 + $0x18] sm:$0xff]
    %v87 = vld [vmem:[#allocation2 + $0x20] sm:$0xff]
    %v88 = vld [vmem:[#allocation2 + $0x28] sm:$0xff]
    %v89 = vld [vmem:[#allocation5] sm:$0xf]
    %v90 = vld [vmem:[#allocation5 + $0x4] sm:$0xf]
    %v91 = vld [vmem:[#allocation5 + $0x8] sm:$0xf]
    %v92 = vld [vmem:[#allocation5 + $0xc] sm:$0xf]
    %v93 = vld [vmem:[#allocation5 + $0x10] sm:$0xf]
    %v94 = vld [vmem:[#allocation5 + $0x14] sm:$0xf]
    %v95 = vld [vmem:[#allocation5 + $0x18] sm:$0xf]
    %v96 = vld [vmem:[#allocation5 + $0x1c] sm:$0xf]
    %v97 = vld [vmem:[#allocation5 + $0x20] sm:$0xf]
    %v98 = vld [vmem:[#allocation5 + $0x24] sm:$0xf]
    %v99 = vld [vmem:[#allocation5 + $0x28] sm:$0xf]
    %v100 = vld [vmem:[#allocation5 + $0x2c] sm:$0xf]
    %v101 = vld [vmem:[#allocation5 + $0x30] sm:$0xf]
    %v102 = vld [vmem:[#allocation5 + $0x34] sm:$0xf]
    %v103 = vld [vmem:[#allocation5 + $0x38] sm:$0xf]
    %v104 = vld [vmem:[#allocation5 + $0x3c] sm:$0xf]
    %v105 = vld [vmem:[#allocation5 + $0x40] sm:$0xf]
    %v106 = vld [vmem:[#allocation5 + $0x44] sm:$0xf]
    %v107 = vld [vmem:[#allocation5 + $0x48] sm:$0xf]
    %v108 = vld [vmem:[#allocation5 + $0x4c] sm:$0xf]
    %v109 = vld [vmem:[#allocation5 + $0x50] sm:$0xf]
    %v110 = vld [vmem:[#allocation5 + $0x54] sm:$0xf]
    %v111 = vld [vmem:[#allocation5 + $0x58] sm:$0xf]
    %v112 = vld [vmem:[#allocation5 + $0x5c] sm:$0xf]
    %v113 = vld [vmem:[#allocation5 + $0x60] sm:$0xf]
    %v114 = vld [vmem:[#allocation5 + $0x64] sm:$0xf]
    %v115 = vld [vmem:[#allocation5 + $0x68] sm:$0xf]
    %v116 = vld [vmem:[#allocation5 + $0x6c] sm:$0xf]
    %v117 = vld [vmem:[#allocation5 + $0x70] sm:$0xf]
    %v118 = vld [vmem:[#allocation5 + $0x74] sm:$0xf]
    %v119 = vld [vmem:[#allocation5 + $0x78] sm:$0xf]
    %v120 = vld [vmem:[#allocation5 + $0x7c] sm:$0xf]
    %v121 = vld [vmem:[#allocation5 + $0x80] sm:$0xf]
    %v122 = vld [vmem:[#allocation5 + $0x84] sm:$0xf]
    %v123 = vld [vmem:[#allocation5 + $0x88] sm:$0xf]
    %v124 = vld [vmem:[#allocation5 + $0x8c] sm:$0xf]
    %v125 = vld [vmem:[#allocation5 + $0x90] sm:$0xf]
    %v126 = vld [vmem:[#allocation5 + $0x94] sm:$0xf]
    %v127 = vld [vmem:[#allocation5 + $0x98] sm:$0xf]
    %v128 = vld [vmem:[#allocation5 + $0x9c] sm:$0xf]
    %v129 = vld [vmem:[#allocation5 + $0xa0] sm:$0xf]
    %v130 = vld [vmem:[#allocation5 + $0xa4] sm:$0xf]
    %v131 = vld [vmem:[#allocation5 + $0xa8] sm:$0xf]
    %v132 = vld [vmem:[#allocation5 + $0xac] sm:$0xf]
    %v133 = vld [vmem:[#allocation5 + $0xb0] sm:$0xf]
    %v134 = vld [vmem:[#allocation5 + $0xb4] sm:$0xf]
    %v135 = vld [vmem:[#allocation5 + $0xb8] sm:$0xf]
    %v136 = vld [vmem:[#allocation5 + $0xbc] sm:$0xf]
    %v137 = vld [vmem:[#allocation5 + $0xc0] sm:$0xf]
    %v138 = vld [vmem:[#allocation5 + $0xc4] sm:$0xf]
    %v139 = vld [vmem:[#allocation5 + $0xc8] sm:$0xf]
    %v140 = vld [vmem:[#allocation5 + $0xcc] sm:$0xf]
    %v141 = vld [vmem:[#allocation5 + $0xd0] sm:$0xf]
    %v142 = vld [vmem:[#allocation5 + $0xd4] sm:$0xf]
    %v143 = vld [vmem:[#allocation5 + $0xd8] sm:$0xf]
    %v144 = vld [vmem:[#allocation5 + $0xdc] sm:$0xf]
    %v145 = vld [vmem:[#allocation5 + $0xe0] sm:$0xf]
    %v146 = vld [vmem:[#allocation5 + $0xe4] sm:$0xf]
    %v147 = vld [vmem:[#allocation5 + $0xe8] sm:$0xf]
    %v148 = vld [vmem:[#allocation5 + $0xec] sm:$0xf]
    %v149 = vld [vmem:[#allocation5 + $0xf0] sm:$0xf]
    %v150 = vld [vmem:[#allocation5 + $0xf4] sm:$0xf]
    %v151 = vld [vmem:[#allocation5 + $0xf8] sm:$0xf]
    %v152 = vld [vmem:[#allocation5 + $0xfc] sm:$0xf]
    %v153 = vld [vmem:[#allocation5 + $0x100] sm:$0xf]
    %v154 = vld [vmem:[#allocation5 + $0x104] sm:$0xf]
    %v155 = vld [vmem:[#allocation5 + $0x108] sm:$0xf]
    %v156 = vld [vmem:[#allocation5 + $0x10c] sm:$0xf]
    %v157 = vld [vmem:[#allocation5 + $0x110] sm:$0xf]
    %v158 = vld [vmem:[#allocation5 + $0x114] sm:$0xf]
    %v159 = vld [vmem:[#allocation5 + $0x118] sm:$0xf]
    %v160 = vld [vmem:[#allocation5 + $0x11c] sm:$0xf]
    %v161 = vld [vmem:[#allocation5 + $0x120] sm:$0xf]
    %v162 = vld [vmem:[#allocation5 + $0x124] sm:$0xf]
    %v163 = vld [vmem:[#allocation5 + $0x128] sm:$0xf]
    %v164 = vld [vmem:[#allocation5 + $0x12c] sm:$0xf]
    %v165 = vld [vmem:[#allocation5 + $0x130] sm:$0xf]
    %v166 = vld [vmem:[#allocation5 + $0x134] sm:$0xf]
    %v167 = vld [vmem:[#allocation5 + $0x138] sm:$0xf]
    %v168 = vld [vmem:[#allocation5 + $0x13c] sm:$0xf]
    %v169 = vld [vmem:[#allocation5 + $0x140] sm:$0xf]
    %v170 = vld [vmem:[#allocation5 + $0x144] sm:$0xf]
    %v171 = vld [vmem:[#allocation5 + $0x148] sm:$0xf]
    %v172 = vld [vmem:[#allocation5 + $0x14c] sm:$0xf]
    %v173 = vld [vmem:[#allocation5 + $0x150] sm:$0xf]
    %v174 = vld [vmem:[#allocation5 + $0x154] sm:$0xf]
    %v175 = vld [vmem:[#allocation5 + $0x158] sm:$0xf]
    %v176 = vld [vmem:[#allocation5 + $0x15c] sm:$0xf]
    %v177 = vld [vmem:[#allocation5 + $0x160] sm:$0xf]
    %v178 = vld [vmem:[#allocation5 + $0x164] sm:$0xf]
    %v179 = vld [vmem:[#allocation5 + $0x168] sm:$0xf]
    %v180 = vld [vmem:[#allocation5 + $0x16c] sm:$0xf]
    %v181 = vld [vmem:[#allocation5 + $0x170] sm:$0xf]
    %v182 = vld [vmem:[#allocation5 + $0x174] sm:$0xf]
    %v183 = vld [vmem:[#allocation5 + $0x178] sm:$0xf]
    %v184 = vld [vmem:[#allocation5 + $0x17c] sm:$0xf]
    %v185 = vld [vmem:[%s2] sm:$0x1]
    %v187 = vlaneseq
    %v188 = vshrl.u32 %v187, 7
    %v189 = vsub.s32 0, %v188
    %v190 = vrot.slane %v185, %v189
    %v198 = vunpack.c.l.b16 %v83
    %v199 = vunpack.c.h.b16 %v83
    %v200 = vunpack.c.l.b16 %v84
    %v201 = vunpack.c.h.b16 %v84
    %v202 = vunpack.c.l.b16 %v85
    %v203 = vunpack.c.h.b16 %v85
    %v204 = vunpack.c.l.b16 %v86
    %v205 = vunpack.c.h.b16 %v86
    %v206 = vunpack.c.l.b16 %v87
    %v207 = vunpack.c.h.b16 %v87
    %v208 = vunpack.c.l.b16 %v88
    %v209 = vunpack.c.h.b16 %v88
    %v210 = vpack.c.b16 %v204, %v198
    %v211 = vpack.c.b16 %v205, %v199
    %v212 = vpack.c.b16 %v206, %v200
    %v213 = vpack.c.b16 %v207, %v201
    %v214 = vpack.c.b16 %v208, %v202
    %v215 = vpack.c.b16 %v209, %v203
    %v318 = vunpack.c.l.b16 %v89
    %v319 = vunpack.c.l.b16 %v90
    %v320 = vunpack.c.l.b16 %v91
    %v321 = vunpack.c.l.b16 %v92
    %v322 = vunpack.c.l.b16 %v93
    %v323 = vunpack.c.l.b16 %v94
    %v324 = vunpack.c.l.b16 %v95
    %v325 = vunpack.c.l.b16 %v96
    %v326 = vunpack.c.l.b16 %v97
    %v327 = vunpack.c.l.b16 %v98
    %v328 = vunpack.c.l.b16 %v99
    %v329 = vunpack.c.l.b16 %v100
    %v330 = vunpack.c.l.b16 %v101
    %v331 = vunpack.c.l.b16 %v102
    %v332 = vunpack.c.l.b16 %v103
    %v333 = vunpack.c.l.b16 %v104
    %v334 = vunpack.c.l.b16 %v105
    %v335 = vunpack.c.l.b16 %v106
    %v336 = vunpack.c.l.b16 %v107
    %v337 = vunpack.c.l.b16 %v108
    %v338 = vunpack.c.l.b16 %v109
    %v339 = vunpack.c.l.b16 %v110
    %v340 = vunpack.c.l.b16 %v111
    %v341 = vunpack.c.l.b16 %v112
    %v342 = vunpack.c.l.b16 %v113
    %v343 = vunpack.c.l.b16 %v114
    %v344 = vunpack.c.l.b16 %v115
    %v345 = vunpack.c.l.b16 %v116
    %v346 = vunpack.c.l.b16 %v117
    %v347 = vunpack.c.l.b16 %v118
    %v348 = vunpack.c.l.b16 %v119
    %v349 = vunpack.c.l.b16 %v120
    %v350 = vunpack.c.l.b16 %v121
    %v351 = vunpack.c.l.b16 %v122
    %v352 = vunpack.c.l.b16 %v123
    %v353 = vunpack.c.l.b16 %v124
    %v354 = vunpack.c.l.b16 %v125
    %v355 = vunpack.c.l.b16 %v126
    %v356 = vunpack.c.l.b16 %v127
    %v357 = vunpack.c.l.b16 %v128
    %v358 = vunpack.c.l.b16 %v129
    %v359 = vunpack.c.l.b16 %v130
    %v360 = vunpack.c.l.b16 %v131
    %v361 = vunpack.c.l.b16 %v132
    %v362 = vunpack.c.l.b16 %v133
    %v363 = vunpack.c.l.b16 %v134
    %v364 = vunpack.c.l.b16 %v135
    %v365 = vunpack.c.l.b16 %v136
    %v366 = vunpack.c.l.b16 %v137
    %v367 = vunpack.c.l.b16 %v138
    %v368 = vunpack.c.l.b16 %v139
    %v369 = vunpack.c.l.b16 %v140
    %v370 = vunpack.c.l.b16 %v141
    %v371 = vunpack.c.l.b16 %v142
    %v372 = vunpack.c.l.b16 %v143
    %v373 = vunpack.c.l.b16 %v144
    %v374 = vunpack.c.l.b16 %v145
    %v375 = vunpack.c.l.b16 %v146
    %v376 = vunpack.c.l.b16 %v147
    %v377 = vunpack.c.l.b16 %v148
    %v378 = vunpack.c.l.b16 %v149
    %v379 = vunpack.c.l.b16 %v150
    %v380 = vunpack.c.l.b16 %v151
    %v381 = vunpack.c.l.b16 %v152
    %v382 = vunpack.c.l.b16 %v153
    %v383 = vunpack.c.l.b16 %v154
    %v384 = vunpack.c.l.b16 %v155
    %v385 = vunpack.c.l.b16 %v156
    %v386 = vunpack.c.l.b16 %v157
    %v387 = vunpack.c.l.b16 %v158
    %v388 = vunpack.c.l.b16 %v159
    %v389 = vunpack.c.l.b16 %v160
    %v390 = vunpack.c.l.b16 %v161
    %v391 = vunpack.c.l.b16 %v162
    %v392 = vunpack.c.l.b16 %v163
    %v393 = vunpack.c.l.b16 %v164
    %v394 = vunpack.c.l.b16 %v165
    %v395 = vunpack.c.l.b16 %v166
    %v396 = vunpack.c.l.b16 %v167
    %v397 = vunpack.c.l.b16 %v168
    %v398 = vunpack.c.l.b16 %v169
    %v399 = vunpack.c.l.b16 %v170
    %v400 = vunpack.c.l.b16 %v171
    %v401 = vunpack.c.l.b16 %v172
    %v402 = vunpack.c.l.b16 %v173
    %v403 = vunpack.c.l.b16 %v174
    %v404 = vunpack.c.l.b16 %v175
    %v405 = vunpack.c.l.b16 %v176
    %v406 = vunpack.c.l.b16 %v177
    %v407 = vunpack.c.l.b16 %v178
    %v408 = vunpack.c.l.b16 %v179
    %v409 = vunpack.c.l.b16 %v180
    %v410 = vunpack.c.l.b16 %v181
    %v411 = vunpack.c.l.b16 %v182
    %v412 = vunpack.c.l.b16 %v183
    %v413 = vunpack.c.l.b16 %v184
    %v414 = vpack.c.b16 %v319, %v318
    %v415 = vpack.c.b16 %v321, %v320
    %v416 = vpack.c.b16 %v323, %v322
    %v417 = vpack.c.b16 %v325, %v324
    %v418 = vpack.c.b16 %v327, %v326
    %v419 = vpack.c.b16 %v329, %v328
    %v420 = vpack.c.b16 %v331, %v330
    %v421 = vpack.c.b16 %v333, %v332
    %v422 = vpack.c.b16 %v335, %v334
    %v423 = vpack.c.b16 %v337, %v336
    %v424 = vpack.c.b16 %v339, %v338
    %v425 = vpack.c.b16 %v341, %v340
    %v426 = vpack.c.b16 %v343, %v342
    %v427 = vpack.c.b16 %v345, %v344
    %v428 = vpack.c.b16 %v347, %v346
    %v429 = vpack.c.b16 %v349, %v348
    %v430 = vpack.c.b16 %v351, %v350
    %v431 = vpack.c.b16 %v353, %v352
    %v432 = vpack.c.b16 %v355, %v354
    %v433 = vpack.c.b16 %v357, %v356
    %v434 = vpack.c.b16 %v359, %v358
    %v435 = vpack.c.b16 %v361, %v360
    %v436 = vpack.c.b16 %v363, %v362
    %v437 = vpack.c.b16 %v365, %v364
    %v438 = vpack.c.b16 %v367, %v366
    %v439 = vpack.c.b16 %v369, %v368
    %v440 = vpack.c.b16 %v371, %v370
    %v441 = vpack.c.b16 %v373, %v372
    %v442 = vpack.c.b16 %v375, %v374
    %v443 = vpack.c.b16 %v377, %v376
    %v444 = vpack.c.b16 %v379, %v378
    %v445 = vpack.c.b16 %v381, %v380
    %v446 = vpack.c.b16 %v383, %v382
    %v447 = vpack.c.b16 %v385, %v384
    %v448 = vpack.c.b16 %v387, %v386
    %v449 = vpack.c.b16 %v389, %v388
    %v450 = vpack.c.b16 %v391, %v390
    %v451 = vpack.c.b16 %v393, %v392
    %v452 = vpack.c.b16 %v395, %v394
    %v453 = vpack.c.b16 %v397, %v396
    %v454 = vpack.c.b16 %v399, %v398
    %v455 = vpack.c.b16 %v401, %v400
    %v456 = vpack.c.b16 %v403, %v402
    %v457 = vpack.c.b16 %v405, %v404
    %v458 = vpack.c.b16 %v407, %v406
    %v459 = vpack.c.b16 %v409, %v408
    %v460 = vpack.c.b16 %v411, %v410
    %v461 = vpack.c.b16 %v413, %v412
    %510 = vmatprep.subr.bf16.mxu0 0
    %511 = vmatpush1.bf16.msra.mxu0 %v414
    %512 = vmatprep.subr.bf16.mxu0 0
    %513 = vmatpush1.bf16.msra.mxu0 %v415
    %514 = vmatprep.subr.bf16.mxu0 0
    %515 = vmatpush1.bf16.msra.mxu0 %v416
    %516 = vmatprep.subr.bf16.mxu0 0
    %517 = vmatpush1.bf16.msra.mxu0 %v417
    %518 = vmatprep.subr.bf16.mxu0 0
    %519 = vmatpush1.bf16.msra.mxu0 %v418
    %520 = vmatprep.subr.bf16.mxu0 0
    %521 = vmatpush1.bf16.msra.mxu0 %v419
    %522 = vmatprep.subr.bf16.mxu0 0
    %523 = vmatpush1.bf16.msra.mxu0 %v420
    %524 = vmatprep.subr.bf16.mxu0 0
    %525 = vmatpush1.bf16.msra.mxu0 %v421
    %526 = vmatprep.subr.bf16.mxu0 0
    %527 = vmatpush1.bf16.msra.mxu0 %v422
    %528 = vmatprep.subr.bf16.mxu0 0
    %529 = vmatpush1.bf16.msra.mxu0 %v423
    %530 = vmatprep.subr.bf16.mxu0 0
    %531 = vmatpush1.bf16.msra.mxu0 %v424
    %532 = vmatprep.subr.bf16.mxu0 0
    %533 = vmatpush1.bf16.msra.mxu0 %v425
    %534 = vmatprep.subr.bf16.mxu0 0
    %535 = vmatpush1.bf16.msra.mxu0 %v426
    %536 = vmatprep.subr.bf16.mxu0 0
    %537 = vmatpush1.bf16.msra.mxu0 %v427
    %538 = vmatprep.subr.bf16.mxu0 0
    %539 = vmatpush1.bf16.msra.mxu0 %v428
    %540 = vmatprep.subr.bf16.mxu0 0
    %541 = vmatpush1.bf16.msra.mxu0 %v429
    %542 = vmatprep.mubr.bf16.mxu0 %v211
    %543 = vmatmul.mubr.bf16.gmra.mrb[0].mxu0 %v210
    %v544 = vpop.f32.mrb[0].mxu0
    %v545 = vadd.f32 %v190, %v544
    %v546 = vpop.f32.mrb[0].mxu0
    %v547 = vpop.f32.mrb[0].mxu0
    %v548 = vadd.f32 %v190, %v547
    %v549 = vpop.f32.mrb[0].mxu0
    %550 = vdwg.mxu0
    %551 = vmatprep.subr.bf16.mxu0 0
    %552 = vmatpush1.bf16.msra.mxu0 %v430
    %553 = vmatprep.subr.bf16.mxu0 0
    %554 = vmatpush1.bf16.msra.mxu0 %v431
    %555 = vmatprep.subr.bf16.mxu0 0
    %556 = vmatpush1.bf16.msra.mxu0 %v432
    %557 = vmatprep.subr.bf16.mxu0 0
    %558 = vmatpush1.bf16.msra.mxu0 %v433
    %559 = vmatprep.subr.bf16.mxu0 0
    %560 = vmatpush1.bf16.msra.mxu0 %v434
    %561 = vmatprep.subr.bf16.mxu0 0
    %562 = vmatpush1.bf16.msra.mxu0 %v435
    %563 = vmatprep.subr.bf16.mxu0 0
    %564 = vmatpush1.bf16.msra.mxu0 %v436
    %565 = vmatprep.subr.bf16.mxu0 0
    %566 = vmatpush1.bf16.msra.mxu0 %v437
    %567 = vmatprep.subr.bf16.mxu0 0
    %568 = vmatpush1.bf16.msra.mxu0 %v438
    %569 = vmatprep.subr.bf16.mxu0 0
    %570 = vmatpush1.bf16.msra.mxu0 %v439
    %571 = vmatprep.subr.bf16.mxu0 0
    %572 = vmatpush1.bf16.msra.mxu0 %v440
    %573 = vmatprep.subr.bf16.mxu0 0
    %574 = vmatpush1.bf16.msra.mxu0 %v441
    %575 = vmatprep.subr.bf16.mxu0 0
    %576 = vmatpush1.bf16.msra.mxu0 %v442
    %577 = vmatprep.subr.bf16.mxu0 0
    %578 = vmatpush1.bf16.msra.mxu0 %v443
    %579 = vmatprep.subr.bf16.mxu0 0
    %580 = vmatpush1.bf16.msra.mxu0 %v444
    %581 = vmatprep.subr.bf16.mxu0 0
    %582 = vmatpush1.bf16.msra.mxu0 %v445
    %583 = vmatprep.mubr.bf16.mxu0 %v213
    %584 = vmatmul.mubr.bf16.gmra.mrb[0].mxu0 %v212
    %v585 = vpop.f32.mrb[0].mxu0
    %v586 = vadd.f32 %v545, %v585
    %v587 = vpop.f32.mrb[0].mxu0
    %v588 = vpop.f32.mrb[0].mxu0
    %v589 = vadd.f32 %v548, %v588
    %v590 = vpop.f32.mrb[0].mxu0
    %591 = vdwg.mxu0
    %592 = vmatprep.subr.bf16.mxu0 0
    %593 = vmatpush1.bf16.msra.mxu0 %v446
    %594 = vmatprep.subr.bf16.mxu0 0
    %595 = vmatpush1.bf16.msra.mxu0 %v447
    %596 = vmatprep.subr.bf16.mxu0 0
    %597 = vmatpush1.bf16.msra.mxu0 %v448
    %598 = vmatprep.subr.bf16.mxu0 0
    %599 = vmatpush1.bf16.msra.mxu0 %v449
    %600 = vmatprep.subr.bf16.mxu0 0
    %601 = vmatpush1.bf16.msra.mxu0 %v450
    %602 = vmatprep.subr.bf16.mxu0 0
    %603 = vmatpush1.bf16.msra.mxu0 %v451
    %604 = vmatprep.subr.bf16.mxu0 0
    %605 = vmatpush1.bf16.msra.mxu0 %v452
    %606 = vmatprep.subr.bf16.mxu0 0
    %607 = vmatpush1.bf16.msra.mxu0 %v453
    %608 = vmatprep.subr.bf16.mxu0 0
    %609 = vmatpush1.bf16.msra.mxu0 %v454
    %610 = vmatprep.subr.bf16.mxu0 0
    %611 = vmatpush1.bf16.msra.mxu0 %v455
    %612 = vmatprep.subr.bf16.mxu0 0
    %613 = vmatpush1.bf16.msra.mxu0 %v456
    %614 = vmatprep.subr.bf16.mxu0 0
    %615 = vmatpush1.bf16.msra.mxu0 %v457
    %616 = vmatprep.subr.bf16.mxu0 0
    %617 = vmatpush1.bf16.msra.mxu0 %v458
    %618 = vmatprep.subr.bf16.mxu0 0
    %619 = vmatpush1.bf16.msra.mxu0 %v459
    %620 = vmatprep.subr.bf16.mxu0 0
    %621 = vmatpush1.bf16.msra.mxu0 %v460
    %622 = vmatprep.subr.bf16.mxu0 0
    %623 = vmatpush1.bf16.msra.mxu0 %v461
    %624 = vmatprep.mubr.bf16.mxu0 %v215
    %625 = vmatmul.mubr.bf16.gmra.mrb[0].mxu0 %v214
    %v626 = vpop.f32.mrb[0].mxu0
    %v627 = vadd.f32 %v586, %v626
    %v628 = vpop.f32.mrb[0].mxu0
    %v629 = vpop.f32.mrb[0].mxu0
    %v630 = vadd.f32 %v589, %v629
    %v631 = vpop.f32.mrb[0].mxu0
    %632 = vdwg.mxu0
    %v633 = vmax.f32 %v627, 0.0
    %v634 = vmax.f32 %v630, 0.0
    %v635 = vpack.c.bf16 %v634, %v633
    %v636 = vld [vmem:[#allocation7] sm:$0xf]
    %v637 = vld [vmem:[#allocation7 + $0x4] sm:$0xf]
    %v638 = vld [vmem:[#allocation7 + $0x8] sm:$0xf]
    %v639 = vld [vmem:[#allocation7 + $0xc] sm:$0xf]
    %v640 = vld [vmem:[#allocation7 + $0x10] sm:$0xf]
    %v641 = vld [vmem:[#allocation7 + $0x14] sm:$0xf]
    %v642 = vld [vmem:[#allocation7 + $0x18] sm:$0xf]
    %v643 = vld [vmem:[#allocation7 + $0x1c] sm:$0xf]
    %v644 = vld [vmem:[#allocation7 + $0x20] sm:$0xf]
    %v645 = vld [vmem:[#allocation7 + $0x24] sm:$0xf]
    %v646 = vld [vmem:[#allocation7 + $0x28] sm:$0xf]
    %v647 = vld [vmem:[#allocation7 + $0x2c] sm:$0xf]
    %v648 = vld [vmem:[#allocation7 + $0x30] sm:$0xf]
    %v649 = vld [vmem:[#allocation7 + $0x34] sm:$0xf]
    %v650 = vld [vmem:[#allocation7 + $0x38] sm:$0xf]
    %v651 = vld [vmem:[#allocation7 + $0x3c] sm:$0xf]
    %v652 = vld [vmem:[%s4] sm:$0x1]
    %v654 = vlaneseq
    %v655 = vshrl.u32 %v654, 7
    %v656 = vsub.s32 0, %v655
    %v657 = vrot.slane %v652, %v656
    %v675 = vunpack.c.l.b16 %v636
    %v676 = vunpack.c.l.b16 %v637
    %v677 = vunpack.c.l.b16 %v638
    %v678 = vunpack.c.l.b16 %v639
    %v679 = vunpack.c.l.b16 %v640
    %v680 = vunpack.c.l.b16 %v641
    %v681 = vunpack.c.l.b16 %v642
    %v682 = vunpack.c.l.b16 %v643
    %v683 = vunpack.c.l.b16 %v644
    %v684 = vunpack.c.l.b16 %v645
    %v685 = vunpack.c.l.b16 %v646
    %v686 = vunpack.c.l.b16 %v647
    %v687 = vunpack.c.l.b16 %v648
    %v688 = vunpack.c.l.b16 %v649
    %v689 = vunpack.c.l.b16 %v650
    %v690 = vunpack.c.l.b16 %v651
    %v691 = vpack.c.b16 %v676, %v675
    %v692 = vpack.c.b16 %v678, %v677
    %v693 = vpack.c.b16 %v680, %v679
    %v694 = vpack.c.b16 %v682, %v681
    %v695 = vpack.c.b16 %v684, %v683
    %v696 = vpack.c.b16 %v686, %v685
    %v697 = vpack.c.b16 %v688, %v687
    %v698 = vpack.c.b16 %v690, %v689
    %707 = vmatprep.subr.bf16.mxu0 0
    %708 = vmatpush1.bf16.msra.mxu0 %v691
    %709 = vmatprep.subr.bf16.mxu0 0
    %710 = vmatpush1.bf16.msra.mxu0 %v692
    %711 = vmatprep.subr.bf16.mxu0 0
    %712 = vmatpush1.bf16.msra.mxu0 %v693
    %713 = vmatprep.subr.bf16.mxu0 0
    %714 = vmatpush1.bf16.msra.mxu0 %v694
    %715 = vmatprep.subr.bf16.mxu0 0
    %716 = vmatpush1.bf16.msra.mxu0 %v695
    %717 = vmatprep.subr.bf16.mxu0 0
    %718 = vmatpush1.bf16.msra.mxu0 %v696
    %719 = vmatprep.subr.bf16.mxu0 0
    %720 = vmatpush1.bf16.msra.mxu0 %v697
    %721 = vmatprep.subr.bf16.mxu0 0
    %722 = vmatpush1.bf16.msra.mxu0 %v698
    %723 = vmatprep.subr.bf16.mxu0 0
    %724 = vmatpush1.bf16.msra.mxu0 0
    %725 = vmatprep.subr.bf16.mxu0 0
    %726 = vmatpush1.bf16.msra.mxu0 0
    %727 = vmatprep.subr.bf16.mxu0 0
    %728 = vmatpush1.bf16.msra.mxu0 0
    %729 = vmatprep.subr.bf16.mxu0 0
    %730 = vmatpush1.bf16.msra.mxu0 0
    %731 = vmatprep.subr.bf16.mxu0 0
    %732 = vmatpush1.bf16.msra.mxu0 0
    %733 = vmatprep.subr.bf16.mxu0 0
    %734 = vmatpush1.bf16.msra.mxu0 0
    %735 = vmatprep.subr.bf16.mxu0 0
    %736 = vmatpush1.bf16.msra.mxu0 0
    %737 = vmatprep.subr.bf16.mxu0 0
    %738 = vmatpush1.bf16.msra.mxu0 0
    %739 = vmatprep.mubr.bf16.mxu0 0
    %740 = vmatmul.mubr.bf16.gmra.mrb[0].mxu0 %v635
    %v741 = vpop.f32.mrb[0].mxu0
    %v742 = vadd.f32 %v657, %v741
    %v743 = vpop.f32.mrb[0].mxu0
    %v744 = vpop.f32.mrb[0].mxu0
    %v745 = vadd.f32 %v657, %v744
    %v746 = vpop.f32.mrb[0].mxu0
    %747 = vdwg.mxu0
    %v748 = vmax.f32 %v742, 0.0
    %v749 = vmax.f32 %v745, 0.0
    %v750 = vpack.c.bf16 %v749, %v748
    %v751 = vld [vmem:[#allocation8] sm:$0xf]
    %v752 = vld [vmem:[#allocation8 + $0x4] sm:$0xf]
    %v753 = vld [vmem:[#allocation8 + $0x8] sm:$0xf]
    %v754 = vld [vmem:[#allocation8 + $0xc] sm:$0xf]
    %v755 = vld [vmem:[#allocation8 + $0x10] sm:$0xf]
    %v756 = vld [vmem:[#allocation8 + $0x14] sm:$0xf]
    %v757 = vld [vmem:[#allocation8 + $0x18] sm:$0xf]
    %v758 = vld [vmem:[#allocation8 + $0x1c] sm:$0xf]
    %v759 = vld [vmem:[#allocation8 + $0x20] sm:$0xf]
    %v760 = vld [vmem:[#allocation8 + $0x24] sm:$0xf]
    %v761 = vld [vmem:[#allocation8 + $0x28] sm:$0xf]
    %v762 = vld [vmem:[#allocation8 + $0x2c] sm:$0xf]
    %v763 = vld [vmem:[#allocation8 + $0x30] sm:$0xf]
    %v764 = vld [vmem:[#allocation8 + $0x34] sm:$0xf]
    %v765 = vld [vmem:[#allocation8 + $0x38] sm:$0xf]
    %v766 = vld [vmem:[#allocation8 + $0x3c] sm:$0xf]
    %v767 = vld [vmem:[%s6] sm:$0x1]
    %v769 = vlaneseq
    %v770 = vshrl.u32 %v769, 7
    %v771 = vsub.s32 0, %v770
    %v772 = vrot.slane %v767, %v771
    %v790 = vunpack.c.l.b16 %v751
    %v791 = vunpack.c.l.b16 %v752
    %v792 = vunpack.c.l.b16 %v753
    %v793 = vunpack.c.l.b16 %v754
    %v794 = vunpack.c.l.b16 %v755
    %v795 = vunpack.c.l.b16 %v756
    %v796 = vunpack.c.l.b16 %v757
    %v797 = vunpack.c.l.b16 %v758
    %v798 = vunpack.c.l.b16 %v759
    %v799 = vunpack.c.l.b16 %v760
    %v800 = vunpack.c.l.b16 %v761
    %v801 = vunpack.c.l.b16 %v762
    %v802 = vunpack.c.l.b16 %v763
    %v803 = vunpack.c.l.b16 %v764
    %v804 = vunpack.c.l.b16 %v765
    %v805 = vunpack.c.l.b16 %v766
    %v806 = vpack.c.b16 %v791, %v790
    %v807 = vpack.c.b16 %v793, %v792
    %v808 = vpack.c.b16 %v795, %v794
    %v809 = vpack.c.b16 %v797, %v796
    %v810 = vpack.c.b16 %v799, %v798
    %v811 = vpack.c.b16 %v801, %v800
    %v812 = vpack.c.b16 %v803, %v802
    %v813 = vpack.c.b16 %v805, %v804
    %822 = vmatprep.subr.bf16.mxu0 0
    %823 = vmatpush1.bf16.msra.mxu0 %v806
    %824 = vmatprep.subr.bf16.mxu0 0
    %825 = vmatpush1.bf16.msra.mxu0 %v807
    %826 = vmatprep.subr.bf16.mxu0 0
    %827 = vmatpush1.bf16.msra.mxu0 %v808
    %828 = vmatprep.subr.bf16.mxu0 0
    %829 = vmatpush1.bf16.msra.mxu0 %v809
    %830 = vmatprep.subr.bf16.mxu0 0
    %831 = vmatpush1.bf16.msra.mxu0 %v810
    %832 = vmatprep.subr.bf16.mxu0 0
    %833 = vmatpush1.bf16.msra.mxu0 %v811
    %834 = vmatprep.subr.bf16.mxu0 0
    %835 = vmatpush1.bf16.msra.mxu0 %v812
    %836 = vmatprep.subr.bf16.mxu0 0
    %837 = vmatpush1.bf16.msra.mxu0 %v813
    %838 = vmatprep.subr.bf16.mxu0 0
    %839 = vmatpush1.bf16.msra.mxu0 0
    %840 = vmatprep.subr.bf16.mxu0 0
    %841 = vmatpush1.bf16.msra.mxu0 0
    %842 = vmatprep.subr.bf16.mxu0 0
    %843 = vmatpush1.bf16.msra.mxu0 0
    %844 = vmatprep.subr.bf16.mxu0 0
    %845 = vmatpush1.bf16.msra.mxu0 0
    %846 = vmatprep.subr.bf16.mxu0 0
    %847 = vmatpush1.bf16.msra.mxu0 0
    %848 = vmatprep.subr.bf16.mxu0 0
    %849 = vmatpush1.bf16.msra.mxu0 0
    %850 = vmatprep.subr.bf16.mxu0 0
    %851 = vmatpush1.bf16.msra.mxu0 0
    %852 = vmatprep.subr.bf16.mxu0 0
    %853 = vmatpush1.bf16.msra.mxu0 0
    %854 = vmatprep.mubr.bf16.mxu0 0
    %855 = vmatmul.mubr.bf16.gmra.mrb[0].mxu0 %v750
    %v856 = vpop.f32.mrb[0].mxu0
    %v857 = vadd.f32 %v772, %v856
    %v858 = vpop.f32.mrb[0].mxu0
    %v859 = vpop.f32.mrb[0].mxu0
    %v860 = vadd.f32 %v772, %v859
    %v861 = vpop.f32.mrb[0].mxu0
    %862 = vdwg.mxu0
    %863 = vst [vmem:[#allocation10] sm:$0xff] %v857
    %864 = vst [vmem:[#allocation10 + $0x8] sm:$0xff] %v860
    // Predicated region
    $region46: #{tpu_custom_call.1} parent=1 // pred_check
      _
    $region47: #{tpu_custom_call.1} parent=1 // pred_check_branch
      %866 = sbr.rel (0) target = $region49
    $region48: #{tpu_custom_call.1} parent=1 // pred_region
      %s868 = ssub.s32 256, 256
      %869 = vsyncadd [#allocation4], %s868
      %s870 = sshll.u32 [#allocation10], 4
      %s871 = int_to_ptr.vmem [resolvable:$true] %s870
      %876 = dma.vmem_to_hbm [thread:$0]  %s871, 256, %s7, [#allocation4], 128, 128, 8
    $region49: #{tpu_custom_call.1} parent=1 // pred_fallthru
      _
    // Predicated region
    $region50: #{tpu_custom_call.1} parent=1 // pred_check
      _
    $region51: #{tpu_custom_call.1} parent=1 // pred_check_branch
      %878 = sbr.rel (0) target = $region53
    $region52: #{tpu_custom_call.1} parent=1 // pred_region
      %879 = dma.done [#allocation4], 256
    $region53: #{tpu_custom_call.1} parent=1 // pred_fallthru
      _
    %880 = vsyncpa [#allocation3], 1
    %881 = vsyncpa [#allocation6], 1
    %882 = vsyncpa [#allocation9], 1
    %883 = vsyncpa [#allocation4], 1

</llo_original>
